<compile_context>
chip_gen: v7x
topology: tpu7x:2x2x1
jax: 0.10.0
libtpu: 0.0.40
codegen_flags: <defaults>
</compile_context>

<pallas_src>
import functools

import jax
import jax.numpy as jnp
from jax.experimental import pallas as pl
from jax.experimental.pallas import tpu as pltpu


def _round_up(v, m):
    return (v + m - 1) // m * m


def _choose_tiles(n, tile_n, tile_k):
    """Clamp tiles to the (128-padded) problem and keep >=2 row tiles when possible."""
    n128 = _round_up(n, 128)
    tile_n = max(128, min(tile_n, n128))
    tile_k = max(128, min(tile_k, n128))
    # v7x megacore: the i (parallel) axis is sharded across 2 TensorCores, so
    # prefer at least two row tiles whenever the graph is big enough.
    if tile_n > 128 and _round_up(n, tile_n) // tile_n < 2:
        tile_n = _round_up(n128 // 2, 128)
    return tile_n, tile_k


def _vmem_limit_bytes():
    """~48 MiB on v7x (64 MiB physical), ~96 MiB on v5e/v6e (128 MiB physical)."""
    try:
        cap = int(getattr(pltpu.get_tpu_info(), "vmem_capacity_bytes", 64 << 20))
    except Exception:  # conservative fallback
        cap = 64 << 20
    return max(32 << 20, min(cap - (16 << 20), 96 << 20))


# ---------------------------------------------------------------------------
# Stage 1: xw = x @ W.T  (tiny matmul, row-tiled)
# ---------------------------------------------------------------------------
def _xw_kernel(x_ref, wt_ref, xw_ref):
    xw_ref[...] = jnp.dot(
        x_ref[...], wt_ref[...], preferred_element_type=jnp.float32
    ).astype(xw_ref.dtype)


# ---------------------------------------------------------------------------
# Stage 2: out = adj @ xw + b  (streamed reduction over adj's column tiles)
# ---------------------------------------------------------------------------
def _gcn_agg_kernel(adj_ref, xw_ref, b_ref, o_ref, acc_ref, *, tile_k):
    k = pl.program_id(1)

    @pl.when(k == 0)
    def _():
        acc_ref[...] = jnp.zeros_like(acc_ref)

    # xw is fully resident in VMEM; slice the k-stripe locally (no HBM re-fetch).
    start = pl.multiple_of(k * tile_k, tile_k)
    xw_stripe = xw_ref[pl.ds(start, tile_k), :]

    # Partial aggregation+projection: acc += adj[i-tile, k-tile] @ xw[k-stripe]
    # (bf16 MXU operands, f32 VMEM accumulation).
    acc_ref[...] += jnp.dot(adj_ref[...], xw_stripe,
                            preferred_element_type=jnp.float32)

    @pl.when(k == pl.num_programs(1) - 1)
    def _():
        # Bias add in f32 (friendly to v5e's non-bf16 VPU).
        # NOTE: padded output rows end up holding the bias (not zero); the
        # wrapper slices them off before returning.
        o_ref[...] = (acc_ref[...] + b_ref[...]).astype(o_ref.dtype)


# ---------------------------------------------------------------------------
# Wrappers
# ---------------------------------------------------------------------------
def prepare_adj(adj, *, tile_n=256, tile_k=512):
    """Cast + pad adj once (cacheable across GCN layers / steps).

    Rows pad to tile_n granularity, cols to tile_k granularity (independent,
    no lcm blowup).  Zero padding is exact in bf16, so padded entries
    contribute nothing to the aggregation.
    """
    n = adj.shape[0]
    tile_n, tile_k = _choose_tiles(n, tile_n, tile_k)
    n_rows_pad = _round_up(n, tile_n)
    n_cols_pad = _round_up(n, tile_k)
    return jnp.pad(adj.astype(jnp.bfloat16),
                   ((0, n_rows_pad - n), (0, n_cols_pad - n)))


@functools.partial(jax.jit, static_argnames=("tile_n", "tile_k"))
def gcn_layer_prepared(x, adj_p, weight, bias, *, tile_n=256, tile_k=512):
    """x: (N, F_in), adj_p: padded bf16 adjacency from prepare_adj,
    weight: (F_out, F_in), bias: (F_out,)."""
    n, f_in = x.shape
    f_out = weight.shape[0]
    n_rows_pad, n_cols_pad = adj_p.shape
    assert n_rows_pad % tile_n == 0 and n_cols_pad % tile_k == 0

    f_in_p = _round_up(f_in, 128)
    f_out_p = _round_up(f_out, 128)
    out_itemsize = jnp.dtype(x.dtype).itemsize
    vmem_limit = _vmem_limit_bytes()

    # Fused pads (no zeros().at[].set() round-trip through HBM).
    x_p = jnp.pad(x.astype(jnp.bfloat16),
                  ((0, n_cols_pad - n), (0, f_in_p - f_in)))
    # Weight transpose hoisted out of the kernels: pass W.T = (F_in, F_out).
    wt_p = jnp.pad(weight.T.astype(jnp.bfloat16),
                   ((0, f_in_p - f_in), (0, f_out_p - f_out)))
    b_p = jnp.pad(bias.astype(jnp.float32), (0, f_out_p - f_out)).reshape(1, f_out_p)

    # ---- Stage 1: xw = x @ W.T (padded rows of x are zero -> zero xw rows) --
    cost_xw = pl.CostEstimate(
        flops=2 * n_cols_pad * f_in_p * f_out_p,
        transcendentals=0,
        bytes_accessed=(n_cols_pad * f_in_p * 2      # x (streamed once)
                        + f_in_p * f_out_p * 2       # W.T (resident)
                        + n_cols_pad * f_out_p * 2), # xw output
    )
    xw = pl.pallas_call(
        _xw_kernel,
        out_shape=jax.ShapeDtypeStruct((n_cols_pad, f_out_p), jnp.bfloat16),
        grid_spec=pltpu.PrefetchScalarGridSpec(
            num_scalar_prefetch=0,
            grid=(n_cols_pad // tile_k,),
            in_specs=[
                pl.BlockSpec((tile_k, f_in_p), lambda i: (i, 0)),
                pl.BlockSpec((f_in_p, f_out_p), lambda i: (0, 0)),  # resident
            ],
            out_specs=pl.BlockSpec((tile_k, f_out_p), lambda i: (i, 0)),
        ),
        compiler_params=pltpu.CompilerParams(
            dimension_semantics=("parallel",),
            vmem_limit_bytes=vmem_limit,
        ),
        cost_estimate=cost_xw,
    )(x_p, wt_p)

    # ---- Stage 2: out = adj @ xw + b ----------------------------------------
    # adj streamed once; xw and bias resident; output written once (lane-dense).
    cost_agg = pl.CostEstimate(
        flops=2 * n_rows_pad * n_cols_pad * f_out_p,
        transcendentals=0,
        bytes_accessed=(n_rows_pad * n_cols_pad * 2      # adj (dominant stream)
                        + n_cols_pad * f_out_p * 2       # xw (fetched once, resident)
                        + f_out_p * 4                    # bias
                        + n_rows_pad * f_out_p * out_itemsize),  # output
    )

    # TODO(synk): for very large graphs (resident xw > a few MiB on v7x's
    # 64 MiB VMEM), fall back to a (k, 0)-indexed xw stripe BlockSpec.
    out_p = pl.pallas_call(
        functools.partial(_gcn_agg_kernel, tile_k=tile_k),
        out_shape=jax.ShapeDtypeStruct((n_rows_pad, f_out_p), x.dtype),
        grid_spec=pltpu.PrefetchScalarGridSpec(
            num_scalar_prefetch=0,
            grid=(n_rows_pad // tile_n, n_cols_pad // tile_k),
            in_specs=[
                # adj row/col tile streams with the grid.
                pl.BlockSpec((tile_n, tile_k), lambda i, k: (i, k)),
                # xw stays resident across the whole grid (fetched once).
                pl.BlockSpec((n_cols_pad, f_out_p), lambda i, k: (0, 0)),
                # bias resident.
                pl.BlockSpec((1, f_out_p), lambda i, k: (0, 0)),
            ],
            out_specs=pl.BlockSpec((tile_n, f_out_p), lambda i, k: (i, 0)),
            scratch_shapes=[pltpu.VMEM((tile_n, f_out_p), jnp.float32)],
        ),
        compiler_params=pltpu.CompilerParams(
            dimension_semantics=("parallel", "arbitrary"),
            vmem_limit_bytes=vmem_limit,
        ),
        cost_estimate=cost_agg,
    )(adj_p, xw, b_p)

    return out_p[:n, :f_out]


def gcn_layer(x, adj, weight, bias, *, tile_n=256, tile_k=512):
    """Convenience wrapper: prepares (casts + pads) adj and runs the layer.
    For multi-layer GCNs, call prepare_adj() once and reuse its output."""
    n = adj.shape[0]
    tile_n, tile_k = _choose_tiles(n, tile_n, tile_k)
    adj_p = prepare_adj(adj, tile_n=tile_n, tile_k=tile_k)
    return gcn_layer_prepared(x, adj_p, weight, bias,
                              tile_n=tile_n, tile_k=tile_k)


if __name__ == "__main__":
    # Small shapes consistent with the module: N nodes, in_features, out_features.
    N, F_IN, F_OUT = 8, 32, 32

    key = jax.random.PRNGKey(0)
    k_x, k_adj, k_w, k_b = jax.random.split(key, 4)

    x = jax.random.normal(k_x, (N, F_IN), dtype=jnp.float32)

    # Symmetric, row-normalized adjacency (typical GCN input).
    a = (jax.random.uniform(k_adj, (N, N)) > 0.5).astype(jnp.float32)
    a = jnp.maximum(a, a.T) + jnp.eye(N, dtype=jnp.float32)
    adj = a / jnp.sum(a, axis=1, keepdims=True)

    # Deterministic nn.Linear-style init: U(-1/sqrt(in), 1/sqrt(in)).
    bound = 1.0 / jnp.sqrt(jnp.float32(F_IN))
    weight = jax.random.uniform(k_w, (F_OUT, F_IN), minval=-bound, maxval=bound,
                                dtype=jnp.float32)
    bias = jax.random.uniform(k_b, (F_OUT,), minval=-bound, maxval=bound,
                              dtype=jnp.float32)

    # Prepare adj once (cacheable across layers), then run the layer.
    tile_n, tile_k = _choose_tiles(N, 256, 512)
    adj_p = prepare_adj(adj, tile_n=tile_n, tile_k=tile_k)
    out = gcn_layer_prepared(x, adj_p, weight, bias,
                             tile_n=tile_n, tile_k=tile_k)
    jax.block_until_ready(out)

    # Sanity check against plain JAX f32 reference (bf16 MXU operands with f32
    # accumulation -> loosened tolerance).
    ref = (adj @ x) @ weight.T + bias
    assert out.shape == (N, F_OUT)
    err = float(jnp.max(jnp.abs(out - ref)))
    assert jnp.allclose(out, ref, atol=2e-2, rtol=2e-2), err

    print("KERNEL_OK")
</pallas_src>

<mosaic_0001>
module attributes {stable_mosaic.version = 11 : i64} {
  func.func @_xw_kernel(%arg0: i32, %arg1: memref<128x128xbf16, #tpu.memory_space<vmem>>, %arg2: memref<128x128xbf16, #tpu.memory_space<vmem>>, %arg3: memref<128x128xbf16, #tpu.memory_space<vmem>>) attributes {dimension_semantics = [#tpu.dimension_semantics<parallel>], iteration_bounds = array<i64: 1>, scalar_prefetch = 0 : i64, scratch_operands = 0 : i64, tpu.core_type = #tpu.core_type<tc>, window_params = [{transform_indices = @transform_0, window_bounds = array<i64: 128, 128>}, {pipeline_mode = #tpu.pipeline_mode<synchronous>, transform_indices = @transform_1, window_bounds = array<i64: 128, 128>}, {transform_indices = @transform_2, window_bounds = array<i64: 128, 128>}]} {
    %c0 = arith.constant 0 : index
    %c0_0 = arith.constant 0 : index
    %0 = vector.load %arg1[%c0, %c0_0] : memref<128x128xbf16, #tpu.memory_space<vmem>>, vector<128x128xbf16>
    %c0_1 = arith.constant 0 : index
    %c0_2 = arith.constant 0 : index
    %1 = vector.load %arg2[%c0_1, %c0_2] : memref<128x128xbf16, #tpu.memory_space<vmem>>, vector<128x128xbf16>
    %cst = arith.constant dense<0.000000e+00> : vector<128x128xf32>
    %2 = tpu.matmul %0, %1, %cst {dimension_numbers = #tpu.dot_dimension_numbers<[1], [0], [0], [1], [0, 0, 1, 1], [], []>} : vector<128x128xbf16>, vector<128x128xbf16>, vector<128x128xf32> -> vector<128x128xf32>
    %3 = arith.truncf %2 : vector<128x128xf32> to vector<128x128xbf16>
    %c0_3 = arith.constant 0 : index
    %c0_4 = arith.constant 0 : index
    %4 = vector.load %arg3[%c0_3, %c0_4] : memref<128x128xbf16, #tpu.memory_space<vmem>>, vector<128x128xbf16>
    tpu.vector_store %arg3[%c0_3, %c0_4], %3 {strides = array<i32>} : memref<128x128xbf16, #tpu.memory_space<vmem>>, vector<128x128xbf16>,
    return
  }
  func.func @transform_0(%arg0: i32) -> (i32, i32) {
    %c0_i32 = arith.constant 0 : i32
    %c0_i32_0 = arith.constant 0 : i32
    return %arg0, %c0_i32 : i32, i32
  }
  func.func @transform_1(%arg0: i32) -> (i32, i32) {
    %c0_i32 = arith.constant 0 : i32
    %c0_i32_0 = arith.constant 0 : i32
    %c0_i32_1 = arith.constant 0 : i32
    return %c0_i32, %c0_i32_0 : i32, i32
  }
  func.func @transform_2(%arg0: i32) -> (i32, i32) {
    %c0_i32 = arith.constant 0 : i32
    %c0_i32_0 = arith.constant 0 : i32
    return %arg0, %c0_i32 : i32, i32
  }
}

module attributes {stable_mosaic.version = 11 : i64} {
  func.func @_gcn_agg_kernel(%arg0: i32, %arg1: i32, %arg2: memref<128x128xbf16, #tpu.memory_space<vmem>>, %arg3: memref<128x128xbf16, #tpu.memory_space<vmem>>, %arg4: memref<1x128xf32, #tpu.memory_space<vmem>>, %arg5: memref<128x128xf32, #tpu.memory_space<vmem>>, %arg6: memref<128x128xf32, #tpu.memory_space<vmem>>) attributes {dimension_semantics = [#tpu.dimension_semantics<parallel>, #tpu.dimension_semantics<arbitrary>], iteration_bounds = array<i64: 1, 1>, scalar_prefetch = 0 : i64, scratch_operands = 1 : i64, tpu.core_type = #tpu.core_type<tc>, window_params = [{transform_indices = @transform_0, window_bounds = array<i64: 128, 128>}, {pipeline_mode = #tpu.pipeline_mode<synchronous>, transform_indices = @transform_1, window_bounds = array<i64: 128, 128>}, {pipeline_mode = #tpu.pipeline_mode<synchronous>, transform_indices = @transform_2, window_bounds = array<i64: 1, 128>}, {transform_indices = @transform_3, window_bounds = array<i64: 128, 128>}]} {
    %c0_i32 = arith.constant 0 : i32
    %0 = arith.cmpi eq, %arg1, %c0_i32 : i32
    %1 = arith.extui %0 : i1 to i32
    %c0_i32_0 = arith.constant 0 : i32
    %2 = arith.cmpi ne, %1, %c0_i32_0 : i32
    scf.if %2 {
      %cst_9 = arith.constant 0.000000e+00 : f32
      %15 = vector.broadcast %cst_9 : f32 to vector<128x128xf32>
      %c0_10 = arith.constant 0 : index
      %c0_11 = arith.constant 0 : index
      %16 = vector.load %arg6[%c0_10, %c0_11] : memref<128x128xf32, #tpu.memory_space<vmem>>, vector<128x128xf32>
      tpu.vector_store %arg6[%c0_10, %c0_11], %15 {strides = array<i32>} : memref<128x128xf32, #tpu.memory_space<vmem>>, vector<128x128xf32>,
    } else {
    }
    %c128_i32 = arith.constant 128 : i32
    %3 = arith.muli %arg1, %c128_i32 : i32
    %4 = tpu.assume_multiple %3, 128 : i32
    %5 = arith.index_cast %4 : i32 to index
    %c0 = arith.constant 0 : index
    %6 = vector.load %arg3[%5, %c0] : memref<128x128xbf16, #tpu.memory_space<vmem>>, vector<128x128xbf16>
    %c0_1 = arith.constant 0 : index
    %c0_2 = arith.constant 0 : index
    %7 = vector.load %arg6[%c0_1, %c0_2] : memref<128x128xf32, #tpu.memory_space<vmem>>, vector<128x128xf32>
    %c0_3 = arith.constant 0 : index
    %c0_4 = arith.constant 0 : index
    %8 = vector.load %arg2[%c0_3, %c0_4] : memref<128x128xbf16, #tpu.memory_space<vmem>>, vector<128x128xbf16>
    %cst = arith.constant dense<0.000000e+00> : vector<128x128xf32>
    %9 = tpu.matmul %8, %6, %cst {dimension_numbers = #tpu.dot_dimension_numbers<[1], [0], [0], [1], [0, 0, 1, 1], [], []>} : vector<128x128xbf16>, vector<128x128xbf16>, vector<128x128xf32> -> vector<128x128xf32>
    %10 = arith.addf %7, %9 : vector<128x128xf32>
    %c0_5 = arith.constant 0 : index
    %c0_6 = arith.constant 0 : index
    %11 = vector.load %arg6[%c0_5, %c0_6] : memref<128x128xf32, #tpu.memory_space<vmem>>, vector<128x128xf32>
    tpu.vector_store %arg6[%c0_5, %c0_6], %10 {strides = array<i32>} : memref<128x128xf32, #tpu.memory_space<vmem>>, vector<128x128xf32>,
    %c0_i32_7 = arith.constant 0 : i32
    %12 = arith.cmpi eq, %arg1, %c0_i32_7 : i32
    %13 = arith.extui %12 : i1 to i32
    %c0_i32_8 = arith.constant 0 : i32
    %14 = arith.cmpi ne, %13, %c0_i32_8 : i32
    scf.if %14 {
      %c0_9 = arith.constant 0 : index
      %c0_10 = arith.constant 0 : index
      %15 = vector.load %arg6[%c0_9, %c0_10] : memref<128x128xf32, #tpu.memory_space<vmem>>, vector<128x128xf32>
      %c0_11 = arith.constant 0 : index
      %c0_12 = arith.constant 0 : index
      %16 = vector.load %arg4[%c0_11, %c0_12] : memref<1x128xf32, #tpu.memory_space<vmem>>, vector<1x128xf32>
      %17 = vector.broadcast %16 : vector<1x128xf32> to vector<128x128xf32>
      %18 = arith.addf %15, %17 : vector<128x128xf32>
      %c0_13 = arith.constant 0 : index
      %c0_14 = arith.constant 0 : index
      %19 = vector.load %arg5[%c0_13, %c0_14] : memref<128x128xf32, #tpu.memory_space<vmem>>, vector<128x128xf32>
      tpu.vector_store %arg5[%c0_13, %c0_14], %18 {strides = array<i32>} : memref<128x128xf32, #tpu.memory_space<vmem>>, vector<128x128xf32>,
    } else {
    }
    return
  }
  func.func @transform_0(%arg0: i32, %arg1: i32) -> (i32, i32) {
    %c0_i32 = arith.constant 0 : i32
    return %arg0, %arg1 : i32, i32
  }
  func.func @transform_1(%arg0: i32, %arg1: i32) -> (i32, i32) {
    %c0_i32 = arith.constant 0 : i32
    %c0_i32_0 = arith.constant 0 : i32
    %c0_i32_1 = arith.constant 0 : i32
    return %c0_i32, %c0_i32_0 : i32, i32
  }
  func.func @transform_2(%arg0: i32, %arg1: i32) -> (i32, i32) {
    %c0_i32 = arith.constant 0 : i32
    %c0_i32_0 = arith.constant 0 : i32
    %c0_i32_1 = arith.constant 0 : i32
    return %c0_i32, %c0_i32_0 : i32, i32
  }
  func.func @transform_3(%arg0: i32, %arg1: i32) -> (i32, i32) {
    %c0_i32 = arith.constant 0 : i32
    %c0_i32_0 = arith.constant 0 : i32
    return %arg0, %c0_i32 : i32, i32
  }
}

</mosaic_0001>

<llo_original>
// kernel: gcn_layer_prepared.3
$region0: #{gcn_layer_prepared.3}
  #allocation0 [shape = 'u32[]', space=smem, size = 0x4, offset = 0x4, fixed_abs, tag = 'smem constant byte address 0x4 - core index']
  #allocation1 [shape = 'u32[144,128]{1,0:T(1,128)}', space=vmem, size = 0x12000, scoped, tag = 'internal scratch']
  #allocation2 [shape = 'f32[128,128]{1,0:T(8,128)}', space=vmem, size = 0x10000, scoped, tag = 'scratch operand']
  %s0 = inlined_call_operand.vmem [shape: bf16[128,128], index: 0, kind: input, shape index: {}]
  %s1 = inlined_call_operand.vmem [shape: bf16[128,128], index: 1, kind: input, shape index: {}]
  %s2 = inlined_call_operand.vmem [shape: f32[1,128], index: 2, kind: input, shape index: {}]
  %s3 = inlined_call_operand.vmem [shape: f32[128,128], index: 3, kind: output, shape index: {}]
  %s4 = sld [smem:[#allocation0]]
  $region30: #{gcn_layer_prepared.3} parent=0
    _
  %s6 = ssub.s32 1, %s4
  %s7 = scalar_select 0, %s6, %s4
  // Predicated region
  $region2: #{gcn_layer_prepared.3} parent=0 // pred_check
    _
  $region3: #{gcn_layer_prepared.3} parent=0 // pred_check_branch
    %9 = sbr.rel (0) target = $region5
  $region4: #{gcn_layer_prepared.3} parent=0 // pred_region
    _
  $region5: #{gcn_layer_prepared.3} parent=0 // pred_fallthru
    _
  // Predicated region
  $region6: #{gcn_layer_prepared.3} parent=0 // pred_check
    _
  $region7: #{gcn_layer_prepared.3} parent=0 // pred_check_branch
    %11 = sbr.rel (0) target = $region9
  $region8: #{gcn_layer_prepared.3} parent=0 // pred_region
    _
  $region9: #{gcn_layer_prepared.3} parent=0 // pred_fallthru
    _
  // Predicated region
  $region10: #{gcn_layer_prepared.3} parent=0 // pred_check
    _
  $region11: #{gcn_layer_prepared.3} parent=0 // pred_check_branch
    %13 = sbr.rel (0) target = $region13
  $region12: #{gcn_layer_prepared.3} parent=0 // pred_region
    _
  $region13: #{gcn_layer_prepared.3} parent=0 // pred_fallthru
    _
  %p15 = scmp.eq.s32.totalorder 0, 0
  // Predicated region
  $region14: #{gcn_layer_prepared.3} parent=0 // pred_check
    %p16 = pneg %p15
  $region15: #{gcn_layer_prepared.3} parent=0 // pred_check_branch
    %18 = sbr.rel (%p16) target = $region17
  $region16: #{gcn_layer_prepared.3} parent=0 // pred_region
    %19 = vst [vmem:[#allocation2] sm:$0xff] 0.0
    %20 = vst [vmem:[#allocation2 + $0x8] sm:$0xff] 0.0
    %21 = vst [vmem:[#allocation2 + $0x10] sm:$0xff] 0.0
    %22 = vst [vmem:[#allocation2 + $0x18] sm:$0xff] 0.0
    %23 = vst [vmem:[#allocation2 + $0x20] sm:$0xff] 0.0
    %24 = vst [vmem:[#allocation2 + $0x28] sm:$0xff] 0.0
    %25 = vst [vmem:[#allocation2 + $0x30] sm:$0xff] 0.0
    %26 = vst [vmem:[#allocation2 + $0x38] sm:$0xff] 0.0
    %27 = vst [vmem:[#allocation2 + $0x40] sm:$0xff] 0.0
    %28 = vst [vmem:[#allocation2 + $0x48] sm:$0xff] 0.0
    %29 = vst [vmem:[#allocation2 + $0x50] sm:$0xff] 0.0
    %30 = vst [vmem:[#allocation2 + $0x58] sm:$0xff] 0.0
    %31 = vst [vmem:[#allocation2 + $0x60] sm:$0xff] 0.0
    %32 = vst [vmem:[#allocation2 + $0x68] sm:$0xff] 0.0
    %33 = vst [vmem:[#allocation2 + $0x70] sm:$0xff] 0.0
    %34 = vst [vmem:[#allocation2 + $0x78] sm:$0xff] 0.0
  $region17: #{gcn_layer_prepared.3} parent=0 // pred_fallthru
    _
  %s35 = smul.u32 0, 128
  %s36 = sshra.s32 %s35, 3
  %s37 = sand.u32 %s35, 7
  %s38 = smul.addr %s36, 4
  %s39 = scalar_lea.vmem %s1, %s38
  %v40 = vld [vmem:[%s39] sm:$0xf]
  %v41 = vld [vmem:[%s39 + $0x4] sm:$0xf]
  %v42 = vld [vmem:[%s39 + $0x8] sm:$0xf]
  %v43 = vld [vmem:[%s39 + $0xc] sm:$0xf]
  %v44 = vld [vmem:[%s39 + $0x10] sm:$0xf]
  %v45 = vld [vmem:[%s39 + $0x14] sm:$0xf]
  %v46 = vld [vmem:[%s39 + $0x18] sm:$0xf]
  %v47 = vld [vmem:[%s39 + $0x1c] sm:$0xf]
  %v48 = vld [vmem:[%s39 + $0x20] sm:$0xf]
  %v49 = vld [vmem:[%s39 + $0x24] sm:$0xf]
  %v50 = vld [vmem:[%s39 + $0x28] sm:$0xf]
  %v51 = vld [vmem:[%s39 + $0x2c] sm:$0xf]
  %v52 = vld [vmem:[%s39 + $0x30] sm:$0xf]
  %v53 = vld [vmem:[%s39 + $0x34] sm:$0xf]
  %v54 = vld [vmem:[%s39 + $0x38] sm:$0xf]
  %v55 = vld [vmem:[%s39 + $0x3c] sm:$0xf]
  %v56 = vld [vmem:[#allocation2] sm:$0xff]
  %v57 = vld [vmem:[#allocation2 + $0x8] sm:$0xff]
  %v58 = vld [vmem:[#allocation2 + $0x10] sm:$0xff]
  %v59 = vld [vmem:[#allocation2 + $0x18] sm:$0xff]
  %v60 = vld [vmem:[#allocation2 + $0x20] sm:$0xff]
  %v61 = vld [vmem:[#allocation2 + $0x28] sm:$0xff]
  %v62 = vld [vmem:[#allocation2 + $0x30] sm:$0xff]
  %v63 = vld [vmem:[#allocation2 + $0x38] sm:$0xff]
  %v64 = vld [vmem:[#allocation2 + $0x40] sm:$0xff]
  %v65 = vld [vmem:[#allocation2 + $0x48] sm:$0xff]
  %v66 = vld [vmem:[#allocation2 + $0x50] sm:$0xff]
  %v67 = vld [vmem:[#allocation2 + $0x58] sm:$0xff]
  %v68 = vld [vmem:[#allocation2 + $0x60] sm:$0xff]
  %v69 = vld [vmem:[#allocation2 + $0x68] sm:$0xff]
  %v70 = vld [vmem:[#allocation2 + $0x70] sm:$0xff]
  %v71 = vld [vmem:[#allocation2 + $0x78] sm:$0xff]
  %v72 = vld [vmem:[%s0] sm:$0xf]
  %v73 = vld [vmem:[%s0 + $0x4] sm:$0xf]
  %v74 = vld [vmem:[%s0 + $0x8] sm:$0xf]
  %v75 = vld [vmem:[%s0 + $0xc] sm:$0xf]
  %v76 = vld [vmem:[%s0 + $0x10] sm:$0xf]
  %v77 = vld [vmem:[%s0 + $0x14] sm:$0xf]
  %v78 = vld [vmem:[%s0 + $0x18] sm:$0xf]
  %v79 = vld [vmem:[%s0 + $0x1c] sm:$0xf]
  %v80 = vld [vmem:[%s0 + $0x20] sm:$0xf]
  %v81 = vld [vmem:[%s0 + $0x24] sm:$0xf]
  %v82 = vld [vmem:[%s0 + $0x28] sm:$0xf]
  %v83 = vld [vmem:[%s0 + $0x2c] sm:$0xf]
  %v84 = vld [vmem:[%s0 + $0x30] sm:$0xf]
  %v85 = vld [vmem:[%s0 + $0x34] sm:$0xf]
  %v86 = vld [vmem:[%s0 + $0x38] sm:$0xf]
  %v87 = vld [vmem:[%s0 + $0x3c] sm:$0xf]
  %v104 = vunpack.c.l.b16 %v72
  %v105 = vunpack.c.l.b16 %v73
  %v106 = vunpack.c.l.b16 %v74
  %v107 = vunpack.c.l.b16 %v75
  %v108 = vunpack.c.l.b16 %v76
  %v109 = vunpack.c.l.b16 %v77
  %v110 = vunpack.c.l.b16 %v78
  %v111 = vunpack.c.l.b16 %v79
  %v112 = vunpack.c.l.b16 %v80
  %v113 = vunpack.c.l.b16 %v81
  %v114 = vunpack.c.l.b16 %v82
  %v115 = vunpack.c.l.b16 %v83
  %v116 = vunpack.c.l.b16 %v84
  %v117 = vunpack.c.l.b16 %v85
  %v118 = vunpack.c.l.b16 %v86
  %v119 = vunpack.c.l.b16 %v87
  %v120 = vpack.c.b16 %v105, %v104
  %v121 = vpack.c.b16 %v107, %v106
  %v122 = vpack.c.b16 %v109, %v108
  %v123 = vpack.c.b16 %v111, %v110
  %v124 = vpack.c.b16 %v113, %v112
  %v125 = vpack.c.b16 %v115, %v114
  %v126 = vpack.c.b16 %v117, %v116
  %v127 = vpack.c.b16 %v119, %v118
  %v152 = vunpack.c.l.b16 %v40
  %v153 = vunpack.c.l.b16 %v41
  %v154 = vunpack.c.l.b16 %v42
  %v155 = vunpack.c.l.b16 %v43
  %v156 = vunpack.c.l.b16 %v44
  %v157 = vunpack.c.l.b16 %v45
  %v158 = vunpack.c.l.b16 %v46
  %v159 = vunpack.c.l.b16 %v47
  %v160 = vunpack.c.l.b16 %v48
  %v161 = vunpack.c.l.b16 %v49
  %v162 = vunpack.c.l.b16 %v50
  %v163 = vunpack.c.l.b16 %v51
  %v164 = vunpack.c.l.b16 %v52
  %v165 = vunpack.c.l.b16 %v53
  %v166 = vunpack.c.l.b16 %v54
  %v167 = vunpack.c.l.b16 %v55
  %v168 = vpack.c.b16 %v153, %v152
  %v169 = vpack.c.b16 %v155, %v154
  %v170 = vpack.c.b16 %v157, %v156
  %v171 = vpack.c.b16 %v159, %v158
  %v172 = vpack.c.b16 %v161, %v160
  %v173 = vpack.c.b16 %v163, %v162
  %v174 = vpack.c.b16 %v165, %v164
  %v175 = vpack.c.b16 %v167, %v166
  %184 = vmatprep.subr.bf16.mxu0 0
  %185 = vmatpush1.bf16.msra.mxu0 %v168
  %186 = vmatprep.subr.bf16.mxu0 0
  %187 = vmatpush1.bf16.msra.mxu0 %v169
  %188 = vmatprep.subr.bf16.mxu0 0
  %189 = vmatpush1.bf16.msra.mxu0 %v170
  %190 = vmatprep.subr.bf16.mxu0 0
  %191 = vmatpush1.bf16.msra.mxu0 %v171
  %192 = vmatprep.subr.bf16.mxu0 0
  %193 = vmatpush1.bf16.msra.mxu0 %v172
  %194 = vmatprep.subr.bf16.mxu0 0
  %195 = vmatpush1.bf16.msra.mxu0 %v173
  %196 = vmatprep.subr.bf16.mxu0 0
  %197 = vmatpush1.bf16.msra.mxu0 %v174
  %198 = vmatprep.subr.bf16.mxu0 0
  %199 = vmatpush1.bf16.msra.mxu0 %v175
  %200 = vmatprep.subr.bf16.mxu0 0
  %201 = vmatpush1.bf16.msra.mxu0 0
  %202 = vmatprep.subr.bf16.mxu0 0
  %203 = vmatpush1.bf16.msra.mxu0 0
  %204 = vmatprep.subr.bf16.mxu0 0
  %205 = vmatpush1.bf16.msra.mxu0 0
  %206 = vmatprep.subr.bf16.mxu0 0
  %207 = vmatpush1.bf16.msra.mxu0 0
  %208 = vmatprep.subr.bf16.mxu0 0
  %209 = vmatpush1.bf16.msra.mxu0 0
  %210 = vmatprep.subr.bf16.mxu0 0
  %211 = vmatpush1.bf16.msra.mxu0 0
  %212 = vmatprep.subr.bf16.mxu0 0
  %213 = vmatpush1.bf16.msra.mxu0 0
  %214 = vmatprep.subr.bf16.mxu0 0
  %215 = vmatpush1.bf16.msra.mxu0 0
  %216 = vmatprep.mubr.bf16.mxu0 0
  %217 = vmatmul.mubr.bf16.gmra.mrb[0].mxu0 %v120
  %v218 = vpop.f32.mrb[0].mxu0
  %v219 = vadd.f32 0.0, %v218
  %v220 = vpop.f32.mrb[0].mxu0
  %v221 = vpop.f32.mrb[0].mxu0
  %v222 = vadd.f32 0.0, %v221
  %v223 = vpop.f32.mrb[0].mxu0
  %224 = vmatprep.mubr.bf16.mxu0 0
  %225 = vmatmul.mubr.bf16.gmra.mrb[0].mxu0 %v121
  %v226 = vpop.f32.mrb[0].mxu0
  %v227 = vadd.f32 0.0, %v226
  %v228 = vpop.f32.mrb[0].mxu0
  %v229 = vpop.f32.mrb[0].mxu0
  %v230 = vadd.f32 0.0, %v229
  %v231 = vpop.f32.mrb[0].mxu0
  %232 = vmatprep.mubr.bf16.mxu0 0
  %233 = vmatmul.mubr.bf16.gmra.mrb[0].mxu0 %v122
  %v234 = vpop.f32.mrb[0].mxu0
  %v235 = vadd.f32 0.0, %v234
  %v236 = vpop.f32.mrb[0].mxu0
  %v237 = vpop.f32.mrb[0].mxu0
  %v238 = vadd.f32 0.0, %v237
  %v239 = vpop.f32.mrb[0].mxu0
  %240 = vmatprep.mubr.bf16.mxu0 0
  %241 = vmatmul.mubr.bf16.gmra.mrb[0].mxu0 %v123
  %v242 = vpop.f32.mrb[0].mxu0
  %v243 = vadd.f32 0.0, %v242
  %v244 = vpop.f32.mrb[0].mxu0
  %v245 = vpop.f32.mrb[0].mxu0
  %v246 = vadd.f32 0.0, %v245
  %v247 = vpop.f32.mrb[0].mxu0
  %248 = vmatprep.mubr.bf16.mxu0 0
  %249 = vmatmul.mubr.bf16.gmra.mrb[0].mxu0 %v124
  %v250 = vpop.f32.mrb[0].mxu0
  %v251 = vadd.f32 0.0, %v250
  %v252 = vpop.f32.mrb[0].mxu0
  %v253 = vpop.f32.mrb[0].mxu0
  %v254 = vadd.f32 0.0, %v253
  %v255 = vpop.f32.mrb[0].mxu0
  %256 = vmatprep.mubr.bf16.mxu0 0
  %257 = vmatmul.mubr.bf16.gmra.mrb[0].mxu0 %v125
  %v258 = vpop.f32.mrb[0].mxu0
  %v259 = vadd.f32 0.0, %v258
  %v260 = vpop.f32.mrb[0].mxu0
  %v261 = vpop.f32.mrb[0].mxu0
  %v262 = vadd.f32 0.0, %v261
  %v263 = vpop.f32.mrb[0].mxu0
  %264 = vmatprep.mubr.bf16.mxu0 0
  %265 = vmatmul.mubr.bf16.gmra.mrb[0].mxu0 %v126
  %v266 = vpop.f32.mrb[0].mxu0
  %v267 = vadd.f32 0.0, %v266
  %v268 = vpop.f32.mrb[0].mxu0
  %v269 = vpop.f32.mrb[0].mxu0
  %v270 = vadd.f32 0.0, %v269
  %v271 = vpop.f32.mrb[0].mxu0
  %272 = vmatprep.mubr.bf16.mxu0 0
  %273 = vmatmul.mubr.bf16.gmra.mrb[0].mxu0 %v127
  %v274 = vpop.f32.mrb[0].mxu0
  %v275 = vadd.f32 0.0, %v274
  %v276 = vpop.f32.mrb[0].mxu0
  %v277 = vpop.f32.mrb[0].mxu0
  %v278 = vadd.f32 0.0, %v277
  %v279 = vpop.f32.mrb[0].mxu0
  %280 = vdwg.mxu0
  %v281 = vadd.f32 %v56, %v219
  %v282 = vadd.f32 %v57, %v222
  %v283 = vadd.f32 %v58, %v227
  %v284 = vadd.f32 %v59, %v230
  %v285 = vadd.f32 %v60, %v235
  %v286 = vadd.f32 %v61, %v238
  %v287 = vadd.f32 %v62, %v243
  %v288 = vadd.f32 %v63, %v246
  %v289 = vadd.f32 %v64, %v251
  %v290 = vadd.f32 %v65, %v254
  %v291 = vadd.f32 %v66, %v259
  %v292 = vadd.f32 %v67, %v262
  %v293 = vadd.f32 %v68, %v267
  %v294 = vadd.f32 %v69, %v270
  %v295 = vadd.f32 %v70, %v275
  %v296 = vadd.f32 %v71, %v278
  %297 = vst [vmem:[#allocation2] sm:$0xff] %v281
  %298 = vst [vmem:[#allocation2 + $0x8] sm:$0xff] %v282
  %299 = vst [vmem:[#allocation2 + $0x10] sm:$0xff] %v283
  %300 = vst [vmem:[#allocation2 + $0x18] sm:$0xff] %v284
  %301 = vst [vmem:[#allocation2 + $0x20] sm:$0xff] %v285
  %302 = vst [vmem:[#allocation2 + $0x28] sm:$0xff] %v286
  %303 = vst [vmem:[#allocation2 + $0x30] sm:$0xff] %v287
  %304 = vst [vmem:[#allocation2 + $0x38] sm:$0xff] %v288
  %305 = vst [vmem:[#allocation2 + $0x40] sm:$0xff] %v289
  %306 = vst [vmem:[#allocation2 + $0x48] sm:$0xff] %v290
  %307 = vst [vmem:[#allocation2 + $0x50] sm:$0xff] %v291
  %308 = vst [vmem:[#allocation2 + $0x58] sm:$0xff] %v292
  %309 = vst [vmem:[#allocation2 + $0x60] sm:$0xff] %v293
  %310 = vst [vmem:[#allocation2 + $0x68] sm:$0xff] %v294
  %311 = vst [vmem:[#allocation2 + $0x70] sm:$0xff] %v295
  %312 = vst [vmem:[#allocation2 + $0x78] sm:$0xff] %v296
  // Predicated region
  $region18: #{gcn_layer_prepared.3} parent=0 // pred_check
    %p313 = pneg %p15
  $region19: #{gcn_layer_prepared.3} parent=0 // pred_check_branch
    %315 = sbr.rel (%p313) target = $region21
  $region20: #{gcn_layer_prepared.3} parent=0 // pred_region
    %v316 = vld [vmem:[#allocation2] sm:$0xff]
    %v317 = vld [vmem:[#allocation2 + $0x8] sm:$0xff]
    %v318 = vld [vmem:[#allocation2 + $0x10] sm:$0xff]
    %v319 = vld [vmem:[#allocation2 + $0x18] sm:$0xff]
    %v320 = vld [vmem:[#allocation2 + $0x20] sm:$0xff]
    %v321 = vld [vmem:[#allocation2 + $0x28] sm:$0xff]
    %v322 = vld [vmem:[#allocation2 + $0x30] sm:$0xff]
    %v323 = vld [vmem:[#allocation2 + $0x38] sm:$0xff]
    %v324 = vld [vmem:[#allocation2 + $0x40] sm:$0xff]
    %v325 = vld [vmem:[#allocation2 + $0x48] sm:$0xff]
    %v326 = vld [vmem:[#allocation2 + $0x50] sm:$0xff]
    %v327 = vld [vmem:[#allocation2 + $0x58] sm:$0xff]
    %v328 = vld [vmem:[#allocation2 + $0x60] sm:$0xff]
    %v329 = vld [vmem:[#allocation2 + $0x68] sm:$0xff]
    %v330 = vld [vmem:[#allocation2 + $0x70] sm:$0xff]
    %v331 = vld [vmem:[#allocation2 + $0x78] sm:$0xff]
    %v332 = vld [vmem:[%s2] sm:$0x1]
    %v334 = vlaneseq
    %v335 = vshrl.u32 %v334, 7
    %v336 = vsub.s32 0, %v335
    %v337 = vrot.slane %v332, %v336
    %v339 = vadd.f32 %v316, %v337
    %v340 = vadd.f32 %v317, %v337
    %v341 = vadd.f32 %v318, %v337
    %v342 = vadd.f32 %v319, %v337
    %v343 = vadd.f32 %v320, %v337
    %v344 = vadd.f32 %v321, %v337
    %v345 = vadd.f32 %v322, %v337
    %v346 = vadd.f32 %v323, %v337
    %v347 = vadd.f32 %v324, %v337
    %v348 = vadd.f32 %v325, %v337
    %v349 = vadd.f32 %v326, %v337
    %v350 = vadd.f32 %v327, %v337
    %v351 = vadd.f32 %v328, %v337
    %v352 = vadd.f32 %v329, %v337
    %v353 = vadd.f32 %v330, %v337
    %v354 = vadd.f32 %v331, %v337
    %355 = vst [vmem:[%s3] sm:$0xff] %v339
    %356 = vst [vmem:[%s3 + $0x8] sm:$0xff] %v340
    %357 = vst [vmem:[%s3 + $0x10] sm:$0xff] %v341
    %358 = vst [vmem:[%s3 + $0x18] sm:$0xff] %v342
    %359 = vst [vmem:[%s3 + $0x20] sm:$0xff] %v343
    %360 = vst [vmem:[%s3 + $0x28] sm:$0xff] %v344
    %361 = vst [vmem:[%s3 + $0x30] sm:$0xff] %v345
    %362 = vst [vmem:[%s3 + $0x38] sm:$0xff] %v346
    %363 = vst [vmem:[%s3 + $0x40] sm:$0xff] %v347
    %364 = vst [vmem:[%s3 + $0x48] sm:$0xff] %v348
    %365 = vst [vmem:[%s3 + $0x50] sm:$0xff] %v349
    %366 = vst [vmem:[%s3 + $0x58] sm:$0xff] %v350
    %367 = vst [vmem:[%s3 + $0x60] sm:$0xff] %v351
    %368 = vst [vmem:[%s3 + $0x68] sm:$0xff] %v352
    %369 = vst [vmem:[%s3 + $0x70] sm:$0xff] %v353
    %370 = vst [vmem:[%s3 + $0x78] sm:$0xff] %v354
  $region21: #{gcn_layer_prepared.3} parent=0 // pred_fallthru
    _
  // Predicated region
  $region22: #{gcn_layer_prepared.3} parent=0 // pred_check
    _
  $region23: #{gcn_layer_prepared.3} parent=0 // pred_check_branch
    %372 = sbr.rel (0) target = $region25
  $region24: #{gcn_layer_prepared.3} parent=0 // pred_region
    _
  $region25: #{gcn_layer_prepared.3} parent=0 // pred_fallthru
    _
  // Predicated region
  $region26: #{gcn_layer_prepared.3} parent=0 // pred_check
    _
  $region27: #{gcn_layer_prepared.3} parent=0 // pred_check_branch
    %374 = sbr.rel (0) target = $region29
  $region28: #{gcn_layer_prepared.3} parent=0 // pred_region
    _
  $region29: #{gcn_layer_prepared.3} parent=0 // pred_fallthru
    _

// kernel: gcn_layer_prepared.2
$region0: #{gcn_layer_prepared.2}
  #allocation0 [shape = 'u32[]', space=smem, size = 0x4, offset = 0x4, fixed_abs, tag = 'smem constant byte address 0x4 - core index']
  #allocation1 [shape = 'u32[144,128]{1,0:T(1,128)}', space=vmem, size = 0x12000, scoped, tag = 'internal scratch']
  %s0 = inlined_call_operand.vmem [shape: bf16[128,128], index: 0, kind: input, shape index: {}]
  %s1 = inlined_call_operand.vmem [shape: bf16[128,128], index: 1, kind: input, shape index: {}]
  %s2 = inlined_call_operand.vmem [shape: bf16[128,128], index: 2, kind: output, shape index: {}]
  %s3 = sld [smem:[#allocation0]]
  $region18: #{gcn_layer_prepared.2} parent=0
    _
  %s5 = ssub.s32 1, %s3
  %s6 = scalar_select 0, %s5, %s3
  // Predicated region
  $region2: #{gcn_layer_prepared.2} parent=0 // pred_check
    _
  $region3: #{gcn_layer_prepared.2} parent=0 // pred_check_branch
    %8 = sbr.rel (0) target = $region5
  $region4: #{gcn_layer_prepared.2} parent=0 // pred_region
    _
  $region5: #{gcn_layer_prepared.2} parent=0 // pred_fallthru
    _
  // Predicated region
  $region6: #{gcn_layer_prepared.2} parent=0 // pred_check
    _
  $region7: #{gcn_layer_prepared.2} parent=0 // pred_check_branch
    %10 = sbr.rel (0) target = $region9
  $region8: #{gcn_layer_prepared.2} parent=0 // pred_region
    _
  $region9: #{gcn_layer_prepared.2} parent=0 // pred_fallthru
    _
  %v12 = vld [vmem:[%s0] sm:$0xf]
  %v13 = vld [vmem:[%s0 + $0x4] sm:$0xf]
  %v14 = vld [vmem:[%s0 + $0x8] sm:$0xf]
  %v15 = vld [vmem:[%s0 + $0xc] sm:$0xf]
  %v16 = vld [vmem:[%s0 + $0x10] sm:$0xf]
  %v17 = vld [vmem:[%s0 + $0x14] sm:$0xf]
  %v18 = vld [vmem:[%s0 + $0x18] sm:$0xf]
  %v19 = vld [vmem:[%s0 + $0x1c] sm:$0xf]
  %v20 = vld [vmem:[%s0 + $0x20] sm:$0xf]
  %v21 = vld [vmem:[%s0 + $0x24] sm:$0xf]
  %v22 = vld [vmem:[%s0 + $0x28] sm:$0xf]
  %v23 = vld [vmem:[%s0 + $0x2c] sm:$0xf]
  %v24 = vld [vmem:[%s0 + $0x30] sm:$0xf]
  %v25 = vld [vmem:[%s0 + $0x34] sm:$0xf]
  %v26 = vld [vmem:[%s0 + $0x38] sm:$0xf]
  %v27 = vld [vmem:[%s0 + $0x3c] sm:$0xf]
  %v28 = vld [vmem:[%s1] sm:$0xf]
  %v29 = vld [vmem:[%s1 + $0x4] sm:$0xf]
  %v30 = vld [vmem:[%s1 + $0x8] sm:$0xf]
  %v31 = vld [vmem:[%s1 + $0xc] sm:$0xf]
  %v32 = vld [vmem:[%s1 + $0x10] sm:$0xf]
  %v33 = vld [vmem:[%s1 + $0x14] sm:$0xf]
  %v34 = vld [vmem:[%s1 + $0x18] sm:$0xf]
  %v35 = vld [vmem:[%s1 + $0x1c] sm:$0xf]
  %v36 = vld [vmem:[%s1 + $0x20] sm:$0xf]
  %v37 = vld [vmem:[%s1 + $0x24] sm:$0xf]
  %v38 = vld [vmem:[%s1 + $0x28] sm:$0xf]
  %v39 = vld [vmem:[%s1 + $0x2c] sm:$0xf]
  %v40 = vld [vmem:[%s1 + $0x30] sm:$0xf]
  %v41 = vld [vmem:[%s1 + $0x34] sm:$0xf]
  %v42 = vld [vmem:[%s1 + $0x38] sm:$0xf]
  %v43 = vld [vmem:[%s1 + $0x3c] sm:$0xf]
  %v60 = vunpack.c.l.b16 %v12
  %v61 = vunpack.c.l.b16 %v13
  %v62 = vunpack.c.l.b16 %v14
  %v63 = vunpack.c.l.b16 %v15
  %v64 = vunpack.c.l.b16 %v16
  %v65 = vunpack.c.l.b16 %v17
  %v66 = vunpack.c.l.b16 %v18
  %v67 = vunpack.c.l.b16 %v19
  %v68 = vunpack.c.l.b16 %v20
  %v69 = vunpack.c.l.b16 %v21
  %v70 = vunpack.c.l.b16 %v22
  %v71 = vunpack.c.l.b16 %v23
  %v72 = vunpack.c.l.b16 %v24
  %v73 = vunpack.c.l.b16 %v25
  %v74 = vunpack.c.l.b16 %v26
  %v75 = vunpack.c.l.b16 %v27
  %v76 = vpack.c.b16 %v61, %v60
  %v77 = vpack.c.b16 %v63, %v62
  %v78 = vpack.c.b16 %v65, %v64
  %v79 = vpack.c.b16 %v67, %v66
  %v80 = vpack.c.b16 %v69, %v68
  %v81 = vpack.c.b16 %v71, %v70
  %v82 = vpack.c.b16 %v73, %v72
  %v83 = vpack.c.b16 %v75, %v74
  %v108 = vunpack.c.l.b16 %v28
  %v109 = vunpack.c.l.b16 %v29
  %v110 = vunpack.c.l.b16 %v30
  %v111 = vunpack.c.l.b16 %v31
  %v112 = vunpack.c.l.b16 %v32
  %v113 = vunpack.c.l.b16 %v33
  %v114 = vunpack.c.l.b16 %v34
  %v115 = vunpack.c.l.b16 %v35
  %v116 = vunpack.c.l.b16 %v36
  %v117 = vunpack.c.l.b16 %v37
  %v118 = vunpack.c.l.b16 %v38
  %v119 = vunpack.c.l.b16 %v39
  %v120 = vunpack.c.l.b16 %v40
  %v121 = vunpack.c.l.b16 %v41
  %v122 = vunpack.c.l.b16 %v42
  %v123 = vunpack.c.l.b16 %v43
  %v124 = vpack.c.b16 %v109, %v108
  %v125 = vpack.c.b16 %v111, %v110
  %v126 = vpack.c.b16 %v113, %v112
  %v127 = vpack.c.b16 %v115, %v114
  %v128 = vpack.c.b16 %v117, %v116
  %v129 = vpack.c.b16 %v119, %v118
  %v130 = vpack.c.b16 %v121, %v120
  %v131 = vpack.c.b16 %v123, %v122
  %140 = vmatprep.subr.bf16.mxu0 0
  %141 = vmatpush1.bf16.msra.mxu0 %v124
  %142 = vmatprep.subr.bf16.mxu0 0
  %143 = vmatpush1.bf16.msra.mxu0 %v125
  %144 = vmatprep.subr.bf16.mxu0 0
  %145 = vmatpush1.bf16.msra.mxu0 %v126
  %146 = vmatprep.subr.bf16.mxu0 0
  %147 = vmatpush1.bf16.msra.mxu0 %v127
  %148 = vmatprep.subr.bf16.mxu0 0
  %149 = vmatpush1.bf16.msra.mxu0 %v128
  %150 = vmatprep.subr.bf16.mxu0 0
  %151 = vmatpush1.bf16.msra.mxu0 %v129
  %152 = vmatprep.subr.bf16.mxu0 0
  %153 = vmatpush1.bf16.msra.mxu0 %v130
  %154 = vmatprep.subr.bf16.mxu0 0
  %155 = vmatpush1.bf16.msra.mxu0 %v131
  %156 = vmatprep.subr.bf16.mxu0 0
  %157 = vmatpush1.bf16.msra.mxu0 0
  %158 = vmatprep.subr.bf16.mxu0 0
  %159 = vmatpush1.bf16.msra.mxu0 0
  %160 = vmatprep.subr.bf16.mxu0 0
  %161 = vmatpush1.bf16.msra.mxu0 0
  %162 = vmatprep.subr.bf16.mxu0 0
  %163 = vmatpush1.bf16.msra.mxu0 0
  %164 = vmatprep.subr.bf16.mxu0 0
  %165 = vmatpush1.bf16.msra.mxu0 0
  %166 = vmatprep.subr.bf16.mxu0 0
  %167 = vmatpush1.bf16.msra.mxu0 0
  %168 = vmatprep.subr.bf16.mxu0 0
  %169 = vmatpush1.bf16.msra.mxu0 0
  %170 = vmatprep.subr.bf16.mxu0 0
  %171 = vmatpush1.bf16.msra.mxu0 0
  %172 = vmatprep.mubr.bf16.mxu0 0
  %173 = vmatmul.mubr.bf16.gmra.mrb[0].mxu0 %v76
  %v174 = vpop.f32.mrb[0].mxu0
  %v175 = vadd.f32 0.0, %v174
  %v176 = vpop.f32.mrb[0].mxu0
  %v177 = vpop.f32.mrb[0].mxu0
  %v178 = vadd.f32 0.0, %v177
  %v179 = vpop.f32.mrb[0].mxu0
  %180 = vmatprep.mubr.bf16.mxu0 0
  %181 = vmatmul.mubr.bf16.gmra.mrb[0].mxu0 %v77
  %v182 = vpop.f32.mrb[0].mxu0
  %v183 = vadd.f32 0.0, %v182
  %v184 = vpop.f32.mrb[0].mxu0
  %v185 = vpop.f32.mrb[0].mxu0
  %v186 = vadd.f32 0.0, %v185
  %v187 = vpop.f32.mrb[0].mxu0
  %188 = vmatprep.mubr.bf16.mxu0 0
  %189 = vmatmul.mubr.bf16.gmra.mrb[0].mxu0 %v78
  %v190 = vpop.f32.mrb[0].mxu0
  %v191 = vadd.f32 0.0, %v190
  %v192 = vpop.f32.mrb[0].mxu0
  %v193 = vpop.f32.mrb[0].mxu0
  %v194 = vadd.f32 0.0, %v193
  %v195 = vpop.f32.mrb[0].mxu0
  %196 = vmatprep.mubr.bf16.mxu0 0
  %197 = vmatmul.mubr.bf16.gmra.mrb[0].mxu0 %v79
  %v198 = vpop.f32.mrb[0].mxu0
  %v199 = vadd.f32 0.0, %v198
  %v200 = vpop.f32.mrb[0].mxu0
  %v201 = vpop.f32.mrb[0].mxu0
  %v202 = vadd.f32 0.0, %v201
  %v203 = vpop.f32.mrb[0].mxu0
  %204 = vmatprep.mubr.bf16.mxu0 0
  %205 = vmatmul.mubr.bf16.gmra.mrb[0].mxu0 %v80
  %v206 = vpop.f32.mrb[0].mxu0
  %v207 = vadd.f32 0.0, %v206
  %v208 = vpop.f32.mrb[0].mxu0
  %v209 = vpop.f32.mrb[0].mxu0
  %v210 = vadd.f32 0.0, %v209
  %v211 = vpop.f32.mrb[0].mxu0
  %212 = vmatprep.mubr.bf16.mxu0 0
  %213 = vmatmul.mubr.bf16.gmra.mrb[0].mxu0 %v81
  %v214 = vpop.f32.mrb[0].mxu0
  %v215 = vadd.f32 0.0, %v214
  %v216 = vpop.f32.mrb[0].mxu0
  %v217 = vpop.f32.mrb[0].mxu0
  %v218 = vadd.f32 0.0, %v217
  %v219 = vpop.f32.mrb[0].mxu0
  %220 = vmatprep.mubr.bf16.mxu0 0
  %221 = vmatmul.mubr.bf16.gmra.mrb[0].mxu0 %v82
  %v222 = vpop.f32.mrb[0].mxu0
  %v223 = vadd.f32 0.0, %v222
  %v224 = vpop.f32.mrb[0].mxu0
  %v225 = vpop.f32.mrb[0].mxu0
  %v226 = vadd.f32 0.0, %v225
  %v227 = vpop.f32.mrb[0].mxu0
  %228 = vmatprep.mubr.bf16.mxu0 0
  %229 = vmatmul.mubr.bf16.gmra.mrb[0].mxu0 %v83
  %v230 = vpop.f32.mrb[0].mxu0
  %v231 = vadd.f32 0.0, %v230
  %v232 = vpop.f32.mrb[0].mxu0
  %v233 = vpop.f32.mrb[0].mxu0
  %v234 = vadd.f32 0.0, %v233
  %v235 = vpop.f32.mrb[0].mxu0
  %236 = vdwg.mxu0
  %v237 = vpack.c.bf16 %v178, %v175
  %v238 = vpack.c.bf16 %v186, %v183
  %v239 = vpack.c.bf16 %v194, %v191
  %v240 = vpack.c.bf16 %v202, %v199
  %v241 = vpack.c.bf16 %v210, %v207
  %v242 = vpack.c.bf16 %v218, %v215
  %v243 = vpack.c.bf16 %v226, %v223
  %v244 = vpack.c.bf16 %v234, %v231
  %v253 = vunpack.c.l.b16 %v237
  %v254 = vunpack.c.h.b16 %v237
  %v255 = vunpack.c.l.b16 %v238
  %v256 = vunpack.c.h.b16 %v238
  %v257 = vunpack.c.l.b16 %v239
  %v258 = vunpack.c.h.b16 %v239
  %v259 = vunpack.c.l.b16 %v240
  %v260 = vunpack.c.h.b16 %v240
  %v261 = vunpack.c.l.b16 %v241
  %v262 = vunpack.c.h.b16 %v241
  %v263 = vunpack.c.l.b16 %v242
  %v264 = vunpack.c.h.b16 %v242
  %v265 = vunpack.c.l.b16 %v243
  %v266 = vunpack.c.h.b16 %v243
  %v267 = vunpack.c.l.b16 %v244
  %v268 = vunpack.c.h.b16 %v244
  %v269 = vpack.c.b16 %v253, %v253
  %v270 = vpack.c.b16 %v254, %v254
  %v271 = vpack.c.b16 %v255, %v255
  %v272 = vpack.c.b16 %v256, %v256
  %v273 = vpack.c.b16 %v257, %v257
  %v274 = vpack.c.b16 %v258, %v258
  %v275 = vpack.c.b16 %v259, %v259
  %v276 = vpack.c.b16 %v260, %v260
  %v277 = vpack.c.b16 %v261, %v261
  %v278 = vpack.c.b16 %v262, %v262
  %v279 = vpack.c.b16 %v263, %v263
  %v280 = vpack.c.b16 %v264, %v264
  %v281 = vpack.c.b16 %v265, %v265
  %v282 = vpack.c.b16 %v266, %v266
  %v283 = vpack.c.b16 %v267, %v267
  %v284 = vpack.c.b16 %v268, %v268
  %301 = vst [vmem:[%s2] sm:$0xf] %v269
  %302 = vst [vmem:[%s2 + $0x4] sm:$0xf] %v270
  %303 = vst [vmem:[%s2 + $0x8] sm:$0xf] %v271
  %304 = vst [vmem:[%s2 + $0xc] sm:$0xf] %v272
  %305 = vst [vmem:[%s2 + $0x10] sm:$0xf] %v273
  %306 = vst [vmem:[%s2 + $0x14] sm:$0xf] %v274
  %307 = vst [vmem:[%s2 + $0x18] sm:$0xf] %v275
  %308 = vst [vmem:[%s2 + $0x1c] sm:$0xf] %v276
  %309 = vst [vmem:[%s2 + $0x20] sm:$0xf] %v277
  %310 = vst [vmem:[%s2 + $0x24] sm:$0xf] %v278
  %311 = vst [vmem:[%s2 + $0x28] sm:$0xf] %v279
  %312 = vst [vmem:[%s2 + $0x2c] sm:$0xf] %v280
  %313 = vst [vmem:[%s2 + $0x30] sm:$0xf] %v281
  %314 = vst [vmem:[%s2 + $0x34] sm:$0xf] %v282
  %315 = vst [vmem:[%s2 + $0x38] sm:$0xf] %v283
  %316 = vst [vmem:[%s2 + $0x3c] sm:$0xf] %v284
  // Predicated region
  $region10: #{gcn_layer_prepared.2} parent=0 // pred_check
    _
  $region11: #{gcn_layer_prepared.2} parent=0 // pred_check_branch
    %318 = sbr.rel (0) target = $region13
  $region12: #{gcn_layer_prepared.2} parent=0 // pred_region
    _
  $region13: #{gcn_layer_prepared.2} parent=0 // pred_fallthru
    _
  // Predicated region
  $region14: #{gcn_layer_prepared.2} parent=0 // pred_check
    _
  $region15: #{gcn_layer_prepared.2} parent=0 // pred_check_branch
    %320 = sbr.rel (0) target = $region17
  $region16: #{gcn_layer_prepared.2} parent=0 // pred_region
    _
  $region17: #{gcn_layer_prepared.2} parent=0 // pred_fallthru
    _

</llo_original>
